<compile_context>
chip_gen: v7x
topology: tpu7x:2x2x1
jax: 0.10.0
libtpu: 0.0.40
codegen_flags: <defaults>
</compile_context>

<pallas_src>
import functools

import jax
import jax.numpy as jnp
from jax import lax
from jax.experimental import pallas as pl
from jax.experimental.pallas import tpu as pltpu


def _vmem_capacity_bytes():
    """Physical VMEM per TensorCore; conservative fallback if query fails."""
    try:
        return int(pltpu.get_tpu_info().vmem_capacity_bytes)
    except Exception:
        return 64 * 1024 * 1024  # v7x-sized fallback (safe everywhere)


def _fast_inv(denom):
    """1/denom via EUP approximate reciprocal + one Newton step (no VALU divide chain)."""
    r = pl.reciprocal(denom, approx=True)
    return r * (2.0 - denom * r)


# --------------------------------------------------------------------------- #
# Fused single-pass kernel (whole working set resident in VMEM): 1R + 1W.
# --------------------------------------------------------------------------- #
def _fused_kernel(x_ref, o_ref, *, n_nodes, scale, eps, scale_individually,
                  pack, feat):
    fp = pack * feat
    x = x_ref[...].astype(jnp.float32)                     # (rows, fp)
    col = jnp.sum(x, axis=0, keepdims=True)                # (1, fp) per-lane sums

    if pack > 1:
        # Fold + re-broadcast the per-feature mean across packed lanes with one
        # tiny MXU matmul: same_feat[a, b] = 1 iff lanes a, b hold the same feature.
        ia = lax.broadcasted_iota(jnp.int32, (fp, fp), 0) % feat
        ib = lax.broadcasted_iota(jnp.int32, (fp, fp), 1) % feat
        same_feat = (ia == ib).astype(jnp.float32)
        mu = jnp.dot(col, same_feat,
                     preferred_element_type=jnp.float32) * (1.0 / n_nodes)
    else:
        mu = col * (1.0 / n_nodes)

    xc = x - mu

    if not scale_individually:
        sq = jnp.sum(xc * xc, axis=1, keepdims=True)        # (rows, 1)
        sq_total = jnp.sum(sq, axis=0, keepdims=True)       # (1, 1)
        coef = scale / jnp.sqrt(eps + sq_total * (1.0 / n_nodes))
        o_ref[...] = (xc * coef).astype(o_ref.dtype)
        return

    if pack == 1:
        sq = jnp.sum(xc * xc, axis=-1, keepdims=True)       # (rows, 1)
        inv = scale * _fast_inv(eps + jnp.sqrt(sq))
        o_ref[...] = (xc * inv).astype(o_ref.dtype)
        return

    # Packed per-node norms: fold lanes -> per-node slots (padded to 8 slots so the
    # MXU contraction dim is never tiny), then expand back.  Padded slots hit
    # zero rows of `expand`, so they contribute nothing.
    grp = lax.broadcasted_iota(jnp.int32, (fp, 8), 0) // feat
    slot = lax.broadcasted_iota(jnp.int32, (fp, 8), 1)
    fold = (grp == slot).astype(jnp.float32)                 # (fp, 8)
    slot_e = lax.broadcasted_iota(jnp.int32, (8, fp), 0)
    grp_e = lax.broadcasted_iota(jnp.int32, (8, fp), 1) // feat
    expand = (slot_e == grp_e).astype(jnp.float32)            # (8, fp)

    sqn = jnp.dot(xc * xc, fold, preferred_element_type=jnp.float32)   # (rows, 8)
    invn = scale * _fast_inv(eps + jnp.sqrt(sqn))
    inv = jnp.dot(invn, expand, preferred_element_type=jnp.float32)    # (rows, fp)
    o_ref[...] = (xc * inv).astype(o_ref.dtype)


# --------------------------------------------------------------------------- #
# Streaming pass 1: per-lane column sums + per-lane sum(x^2), per-core partials.
# --------------------------------------------------------------------------- #
def _stats_kernel(x_ref, colsum_ref, sqsum_ref, *, n_rows, tile_rows, need_mask):
    j = pl.program_id(1)                      # streaming ("arbitrary") axis

    @pl.when(j == 0)
    def _init():
        colsum_ref[...] = jnp.zeros_like(colsum_ref)
        sqsum_ref[...] = jnp.zeros_like(sqsum_ref)

    def _accum(x):
        colsum_ref[0:1, :] += jnp.sum(x, axis=0, keepdims=True)
        sqsum_ref[0:1, :] += jnp.sum(x * x, axis=0, keepdims=True)

    if not need_mask:
        _accum(x_ref[...].astype(jnp.float32))
    else:
        # Global tile index (core split + streaming index); mask only ragged /
        # overhang tiles — interior tiles take the unmasked path.
        t = pl.program_id(0) * pl.num_programs(1) + j
        full = (t + 1) * tile_rows <= n_rows

        @pl.when(full)
        def _full():
            _accum(x_ref[...].astype(jnp.float32))

        @pl.when(jnp.logical_not(full))
        def _ragged():
            x = x_ref[...].astype(jnp.float32)
            row = lax.broadcasted_iota(jnp.int32, x.shape, 0) + t * tile_rows
            _accum(jnp.where(row < n_rows, x, 0.0))


# --------------------------------------------------------------------------- #
# Streaming pass 2: out = scale * (x - mu) / denom.
# --------------------------------------------------------------------------- #
def _normalize_kernel(*refs, scale, eps, scale_individually, pack, feat):
    if not scale_individually:
        mu_ref, coef_ref, x_ref, o_ref = refs
        xc = x_ref[...].astype(jnp.float32) - mu_ref[...]
        o_ref[...] = (xc * coef_ref[0]).astype(o_ref.dtype)   # scalar coeff from SMEM
        return

    if pack == 1:
        mu_ref, x_ref, o_ref = refs
        xc = x_ref[...].astype(jnp.float32) - mu_ref[...]
        sq = jnp.sum(xc * xc, axis=-1, keepdims=True)          # (tile, 1)
        inv = scale * _fast_inv(eps + jnp.sqrt(sq))
        o_ref[...] = (xc * inv).astype(o_ref.dtype)
        return

    # Packed per-node norms; fold/expand 0/1 matrices are hoisted out of the
    # kernel and passed as small resident VMEM inputs.
    mu_ref, fold_ref, expand_ref, x_ref, o_ref = refs
    xc = x_ref[...].astype(jnp.float32) - mu_ref[...]
    sqn = jnp.dot(xc * xc, fold_ref[...],
                  preferred_element_type=jnp.float32)           # (tile, 8)
    invn = scale * _fast_inv(eps + jnp.sqrt(sqn))
    inv = jnp.dot(invn, expand_ref[...],
                  preferred_element_type=jnp.float32)           # (tile, fp)
    o_ref[...] = (xc * inv).astype(o_ref.dtype)


# --------------------------------------------------------------------------- #
# Wrapper.
# --------------------------------------------------------------------------- #
@functools.partial(
    jax.jit,
    static_argnames=("scale", "scale_individually", "eps", "block_rows", "fused"))
def pair_norm(x, *, scale=1.0, scale_individually=False, eps=1e-5,
              block_rows=None, fused=None):
    """PairNorm forward (batch=None).  x: [N, F] -> [N, F] (same dtype)."""
    N, F = x.shape
    out_dtype = x.dtype
    itemsize = int(jnp.dtype(x.dtype).itemsize)

    # ---- lane packing: largest power-of-two pack dividing both 128//F and N ----
    pack = 1
    if F < 128 and 128 % F == 0:
        pack = 128 // F
        while pack > 1 and N % pack != 0:
            pack //= 2
    n_rows = N // pack
    fp = F * pack
    xp = x.reshape(n_rows, fp)                 # row-major contiguous => free reshape

    # ---- generation-aware VMEM budget ----
    vmem_cap = _vmem_capacity_bytes()
    vmem_budget = int(min(0.65 * vmem_cap, 96 * 1024 * 1024))   # ~42 MiB v7x, ~83 MiB v5e/v6e

    # ---- fused single-call fast path (1 read + 1 write, exact centered math) ----
    fused_bytes = n_rows * fp * (4 * itemsize + 5 * 4)  # dbl-buffered I/O + f32 temps
    if fused is None:
        fused = fused_bytes <= vmem_budget // 2
    if fused:
        out = pl.pallas_call(
            functools.partial(_fused_kernel, n_nodes=N, scale=float(scale),
                              eps=float(eps),
                              scale_individually=bool(scale_individually),
                              pack=pack, feat=F),
            out_shape=jax.ShapeDtypeStruct((n_rows, fp), out_dtype),
            grid=(1,),
            in_specs=[pl.BlockSpec((n_rows, fp), lambda i: (0, 0))],
            out_specs=pl.BlockSpec((n_rows, fp), lambda i: (0, 0)),
            compiler_params=pltpu.CompilerParams(
                dimension_semantics=("arbitrary",),
                vmem_limit_bytes=vmem_budget),
            cost_estimate=pl.CostEstimate(
                flops=6 * N * F,
                transcendentals=(N if scale_individually else 1),
                bytes_accessed=2 * N * F * itemsize),
        )(xp)
        return out.reshape(N, F)

    # ---- streaming two-pass path: row-tile sizing (f32-equivalent footprint) ----
    if block_rows is None:
        target_bytes = 8 * 1024 * 1024                    # ~8 MiB per tile
        block_rows = max(8, target_bytes // max(1, fp * max(itemsize, 4)))
    per_row_bytes = fp * (4 * itemsize + 4 * 4)           # dbl-buf I/O + f32 temps
    max_rows = max(8, (vmem_budget // max(1, per_row_bytes)) // 8 * 8)
    tile = int(min(n_rows, int(block_rows), max_rows))
    if tile < n_rows:
        tile = max(8, (tile // 8) * 8)
    n_tiles = pl.cdiv(n_rows, tile)

    # Split pass 1 over 2 TensorCores (megacore on v7x); harmless on 1-TC chips.
    n_core = 2 if n_tiles >= 2 else 1
    inner = pl.cdiv(n_tiles, n_core)
    need_mask = (n_rows % tile != 0) or (n_core * inner != n_tiles)

    def x_map_stats(c, j):
        return (jnp.minimum(c * inner + j, n_tiles - 1), 0)

    # -------------------- pass 1: sufficient statistics ---------------------
    col_part, sq_part = pl.pallas_call(
        functools.partial(_stats_kernel, n_rows=n_rows, tile_rows=tile,
                          need_mask=need_mask),
        out_shape=(jax.ShapeDtypeStruct((8 * n_core, fp), jnp.float32),
                   jax.ShapeDtypeStruct((8 * n_core, fp), jnp.float32)),
        grid=(n_core, inner),
        in_specs=[pl.BlockSpec((tile, fp), x_map_stats)],
        out_specs=(pl.BlockSpec((8, fp), lambda c, j: (c, 0)),
                   pl.BlockSpec((8, fp), lambda c, j: (c, 0))),
        compiler_params=pltpu.CompilerParams(
            dimension_semantics=("parallel", "arbitrary"),
            vmem_limit_bytes=vmem_budget),
        cost_estimate=pl.CostEstimate(
            flops=3 * N * F, transcendentals=0,
            bytes_accessed=N * F * itemsize + 2 * 8 * n_core * fp * 4),
    )(xp)

    # ---- tiny plain-JAX epilogue: fold partials / packed lanes, scalar coeff ----
    col_sum = jnp.sum(col_part, axis=0)                          # (fp,)
    col_feat = col_sum.reshape(pack, F).sum(axis=0)              # (F,)
    mu = col_feat * (1.0 / N)
    mu_packed = jnp.tile(mu.reshape(1, F), (1, pack)).astype(jnp.float32)

    args = [mu_packed]
    in_specs = [pl.BlockSpec((1, fp), lambda i: (0, 0))]         # mu (resident)

    if not scale_individually:
        # sum_i ||x_i - mu||^2 = sum_f (sumsq_f - N * mu_f^2), per-feature, clamped.
        sq_lanes = jnp.sum(sq_part, axis=0)                      # (fp,)
        sq_feat = sq_lanes.reshape(pack, F).sum(axis=0)          # (F,)
        sq_xc = jnp.sum(jnp.maximum(sq_feat - N * mu * mu, 0.0))
        coef = scale * lax.rsqrt(eps + sq_xc * (1.0 / N))
        args.append(jnp.asarray(coef, jnp.float32).reshape(1))
        in_specs.append(pl.BlockSpec(memory_space=pltpu.MemorySpace.SMEM))
    elif pack > 1:
        # Hoisted constant fold/expand matrices (padded to 8 node slots).
        grp = jnp.arange(fp, dtype=jnp.int32) // F               # (fp,)
        slot = jnp.arange(8, dtype=jnp.int32)
        fold = (grp[:, None] == slot[None, :]).astype(jnp.float32)    # (fp, 8)
        expand = (slot[:, None] == grp[None, :]).astype(jnp.float32)  # (8, fp)
        args += [fold, expand]
        in_specs += [pl.BlockSpec((fp, 8), lambda i: (0, 0)),
                     pl.BlockSpec((8, fp), lambda i: (0, 0))]

    args.append(xp)
    in_specs.append(pl.BlockSpec((tile, fp), lambda i: (i, 0)))

    # -------------------------- pass 2: normalize ---------------------------
    out = pl.pallas_call(
        functools.partial(_normalize_kernel, scale=float(scale), eps=float(eps),
                          scale_individually=bool(scale_individually),
                          pack=pack, feat=F),
        out_shape=jax.ShapeDtypeStruct((n_rows, fp), out_dtype),
        grid=(n_tiles,),
        in_specs=in_specs,
        out_specs=pl.BlockSpec((tile, fp), lambda i: (i, 0)),
        compiler_params=pltpu.CompilerParams(
            dimension_semantics=("parallel",),
            vmem_limit_bytes=vmem_budget),
        cost_estimate=pl.CostEstimate(
            flops=4 * N * F,
            transcendentals=(N if scale_individually else 0),
            bytes_accessed=2 * N * F * itemsize),
    )(*args)

    return out.reshape(N, F)


def _pair_norm_ref(x, *, scale=1.0, scale_individually=False, eps=1e-5):
    """Plain-JAX reference (mirrors the PyTorch forward, batch=None)."""
    x = x.astype(jnp.float32)
    xc = x - jnp.mean(x, axis=0, keepdims=True)
    if not scale_individually:
        return scale * xc / jnp.sqrt(eps + jnp.mean(jnp.sum(xc ** 2, axis=-1)))
    return scale * xc / (eps + jnp.linalg.norm(xc, axis=-1, keepdims=True))


if __name__ == "__main__":
    key = jax.random.PRNGKey(0)
    k0, k1, k2 = jax.random.split(key, 3)

    # (1) 128 nodes x 32 features -> fused single-pass path, lane-packed (4 rows/vreg row)
    x = jax.random.normal(k0, (128, 32), dtype=jnp.float32)
    for indiv in (False, True):
        out = jax.block_until_ready(
            pair_norm(x, scale=1.0, scale_individually=indiv, eps=1e-5))
        ref = _pair_norm_ref(x, scale=1.0, scale_individually=indiv, eps=1e-5)
        tol = 1e-3 if indiv else 2e-5        # indiv path uses EUP approx rcp + Newton
        assert out.shape == ref.shape and out.dtype == x.dtype
        assert jnp.allclose(out, ref, atol=tol, rtol=tol), \
            f"mismatch (fused, indiv={indiv})"

    # (2) streaming two-pass path: multi-tile grid, ragged last tile, dual-core pass-1
    x2 = jax.random.normal(k1, (200, 64), dtype=jnp.float32)
    for indiv in (False, True):
        out2 = jax.block_until_ready(
            pair_norm(x2, scale=1.5, scale_individually=indiv, eps=1e-5,
                      block_rows=32, fused=False))
        ref2 = _pair_norm_ref(x2, scale=1.5, scale_individually=indiv, eps=1e-5)
        tol = 1e-3 if indiv else 2e-5
        assert jnp.allclose(out2, ref2, atol=tol, rtol=tol), \
            f"mismatch (streaming, indiv={indiv})"

    # (3) F=128 (no packing), streaming, per-row lane reduction
    x3 = jax.random.normal(k2, (256, 128), dtype=jnp.float32)
    for indiv in (False, True):
        out3 = jax.block_until_ready(
            pair_norm(x3, scale=2.0, scale_individually=indiv, eps=1e-5,
                      block_rows=64, fused=False))
        ref3 = _pair_norm_ref(x3, scale=2.0, scale_individually=indiv, eps=1e-5)
        tol = 1e-3 if indiv else 2e-5
        assert jnp.allclose(out3, ref3, atol=tol, rtol=tol), \
            f"mismatch (F=128, indiv={indiv})"

    # (4) bf16 I/O (f32 accumulation inside kernels)
    xb = x.astype(jnp.bfloat16)
    outb = jax.block_until_ready(pair_norm(xb))
    refb = _pair_norm_ref(xb)
    assert outb.dtype == jnp.bfloat16
    assert jnp.allclose(outb.astype(jnp.float32), refb, atol=1e-2, rtol=5e-2), \
        "mismatch (bf16)"

    print("KERNEL_OK")
</pallas_src>

<mosaic_0001>
module attributes {stable_mosaic.version = 11 : i64} {
  func.func @_fused_kernel(%arg0: i32, %arg1: memref<32x128xf32, #tpu.memory_space<vmem>>, %arg2: memref<32x128xf32, #tpu.memory_space<vmem>>) attributes {dimension_semantics = [#tpu.dimension_semantics<arbitrary>], iteration_bounds = array<i64: 1>, scalar_prefetch = 0 : i64, scratch_operands = 0 : i64, tpu.core_type = #tpu.core_type<tc>, window_params = [{pipeline_mode = #tpu.pipeline_mode<synchronous>, transform_indices = @transform_0, window_bounds = array<i64: 32, 128>}, {pipeline_mode = #tpu.pipeline_mode<synchronous>, transform_indices = @transform_1, window_bounds = array<i64: 32, 128>}]} {
    %c0 = arith.constant 0 : index
    %c0_0 = arith.constant 0 : index
    %0 = vector.load %arg1[%c0, %c0_0] : memref<32x128xf32, #tpu.memory_space<vmem>>, vector<32x128xf32>
    %cst = arith.constant dense<0.000000e+00> : vector<128xf32>
    %1 = vector.multi_reduction <add>, %0, %cst [0] : vector<32x128xf32> to vector<128xf32>
    %2 = vector.shape_cast %1 : vector<128xf32> to vector<1x128xf32>
    %3 = tpu.iota {dimensions = array<i32: 0>} : vector<128x128xi32>
    %c32_i32 = arith.constant 32 : i32
    %c0_i32 = arith.constant 0 : i32
    %4 = arith.cmpi eq, %c32_i32, %c0_i32 : i32
    %c1_i32 = arith.constant 1 : i32
    %5 = arith.select %4, %c1_i32, %c32_i32 : i32
    %6 = vector.broadcast %5 : i32 to vector<128x128xi32>
    %7 = arith.remsi %3, %6 : vector<128x128xi32>
    %c0_i32_1 = arith.constant 0 : i32
    %8 = vector.broadcast %c0_i32_1 : i32 to vector<128x128xi32>
    %9 = arith.cmpi ne, %7, %8 : vector<128x128xi32>
    %c0_i32_2 = arith.constant 0 : i32
    %10 = vector.broadcast %c0_i32_2 : i32 to vector<128x128xi32>
    %11 = arith.cmpi slt, %7, %10 : vector<128x128xi32>
    %c0_i32_3 = arith.constant 0 : i32
    %12 = arith.cmpi slt, %5, %c0_i32_3 : i32
    %13 = vector.broadcast %12 : i1 to vector<128x128xi1>
    %14 = vector.broadcast %13 : vector<128x128xi1> to vector<128x128xi1>
    %15 = arith.xori %11, %14 : vector<128x128xi1>
    %16 = arith.andi %15, %9 : vector<128x128xi1>
    %17 = vector.broadcast %5 : i32 to vector<128x128xi32>
    %18 = arith.addi %7, %17 : vector<128x128xi32>
    %19 = arith.select %16, %18, %7 : vector<128x128xi1>, vector<128x128xi32>
    %20 = tpu.iota {dimensions = array<i32: 1>} : vector<128x128xi32>
    %c32_i32_4 = arith.constant 32 : i32
    %c0_i32_5 = arith.constant 0 : i32
    %21 = arith.cmpi eq, %c32_i32_4, %c0_i32_5 : i32
    %c1_i32_6 = arith.constant 1 : i32
    %22 = arith.select %21, %c1_i32_6, %c32_i32_4 : i32
    %23 = vector.broadcast %22 : i32 to vector<128x128xi32>
    %24 = arith.remsi %20, %23 : vector<128x128xi32>
    %c0_i32_7 = arith.constant 0 : i32
    %25 = vector.broadcast %c0_i32_7 : i32 to vector<128x128xi32>
    %26 = arith.cmpi ne, %24, %25 : vector<128x128xi32>
    %c0_i32_8 = arith.constant 0 : i32
    %27 = vector.broadcast %c0_i32_8 : i32 to vector<128x128xi32>
    %28 = arith.cmpi slt, %24, %27 : vector<128x128xi32>
    %c0_i32_9 = arith.constant 0 : i32
    %29 = arith.cmpi slt, %22, %c0_i32_9 : i32
    %30 = vector.broadcast %29 : i1 to vector<128x128xi1>
    %31 = vector.broadcast %30 : vector<128x128xi1> to vector<128x128xi1>
    %32 = arith.xori %28, %31 : vector<128x128xi1>
    %33 = arith.andi %32, %26 : vector<128x128xi1>
    %34 = vector.broadcast %22 : i32 to vector<128x128xi32>
    %35 = arith.addi %24, %34 : vector<128x128xi32>
    %36 = arith.select %33, %35, %24 : vector<128x128xi1>, vector<128x128xi32>
    %37 = arith.cmpi eq, %19, %36 : vector<128x128xi32>
    %38 = arith.extui %37 : vector<128x128xi1> to vector<128x128xi32>
    %39 = arith.sitofp %38 : vector<128x128xi32> to vector<128x128xf32>
    %cst_10 = arith.constant dense<0.000000e+00> : vector<1x128xf32>
    %40 = tpu.matmul %2, %39, %cst_10 {dimension_numbers = #tpu.dot_dimension_numbers<[1], [0], [0], [1], [0, 0, 1, 1], [], []>} : vector<1x128xf32>, vector<128x128xf32>, vector<1x128xf32> -> vector<1x128xf32>
    %cst_11 = arith.constant 7.812500e-03 : f32
    %41 = vector.broadcast %cst_11 : f32 to vector<1x128xf32>
    %42 = arith.mulf %40, %41 : vector<1x128xf32>
    %43 = vector.broadcast %42 : vector<1x128xf32> to vector<32x128xf32>
    %44 = arith.subf %0, %43 : vector<32x128xf32>
    %45 = arith.mulf %44, %44 : vector<32x128xf32>
    %cst_12 = arith.constant dense<0.000000e+00> : vector<32xf32>
    %46 = vector.multi_reduction <add>, %45, %cst_12 [1] : vector<32x128xf32> to vector<32xf32>
    %47 = vector.shape_cast %46 : vector<32xf32> to vector<32x1xf32>
    %cst_13 = arith.constant dense<0.000000e+00> : vector<1xf32>
    %48 = vector.multi_reduction <add>, %47, %cst_13 [0] : vector<32x1xf32> to vector<1xf32>
    %49 = vector.shape_cast %48 : vector<1xf32> to vector<1x1xf32>
    %cst_14 = arith.constant 7.812500e-03 : f32
    %50 = vector.broadcast %cst_14 : f32 to vector<1x1xf32>
    %51 = arith.mulf %49, %50 : vector<1x1xf32>
    %cst_15 = arith.constant 9.99999974E-6 : f32
    %52 = vector.broadcast %cst_15 : f32 to vector<1x1xf32>
    %53 = arith.addf %52, %51 : vector<1x1xf32>
    %54 = math.sqrt %53 : vector<1x1xf32>
    %cst_16 = arith.constant 1.000000e+00 : f32
    %55 = vector.broadcast %cst_16 : f32 to vector<1x1xf32>
    %56 = arith.divf %55, %54 : vector<1x1xf32>
    %57 = vector.broadcast %56 : vector<1x1xf32> to vector<32x128xf32>
    %58 = arith.mulf %44, %57 : vector<32x128xf32>
    %c0_17 = arith.constant 0 : index
    %c0_18 = arith.constant 0 : index
    %59 = vector.load %arg2[%c0_17, %c0_18] : memref<32x128xf32, #tpu.memory_space<vmem>>, vector<32x128xf32>
    tpu.vector_store %arg2[%c0_17, %c0_18], %58 {strides = array<i32>} : memref<32x128xf32, #tpu.memory_space<vmem>>, vector<32x128xf32>,
    return
  }
  func.func @transform_0(%arg0: i32) -> (i32, i32) {
    %c0_i32 = arith.constant 0 : i32
    %c0_i32_0 = arith.constant 0 : i32
    %c0_i32_1 = arith.constant 0 : i32
    return %c0_i32, %c0_i32_0 : i32, i32
  }
  func.func @transform_1(%arg0: i32) -> (i32, i32) {
    %c0_i32 = arith.constant 0 : i32
    %c0_i32_0 = arith.constant 0 : i32
    %c0_i32_1 = arith.constant 0 : i32
    return %c0_i32, %c0_i32_0 : i32, i32
  }
}

</mosaic_0001>

<llo_original>
// kernel: pair_norm.1
$region0: #{pair_norm.1}
  #allocation0 [shape = 'u32[]', space=smem, size = 0x4, offset = 0x4, fixed_abs, tag = 'smem constant byte address 0x4 - core index']
  #allocation1 [shape = 'u32[144,128]{1,0:T(1,128)}', space=vmem, size = 0x12000, scoped, tag = 'internal scratch']
  %s0 = inlined_call_operand.vmem [shape: f32[32,128], index: 0, kind: input, shape index: {}]
  %s1 = inlined_call_operand.vmem [shape: f32[32,128], index: 1, kind: output, shape index: {}]
  %s2 = sld [smem:[#allocation0]]
  $region14: #{pair_norm.1} parent=0
    _
  %s4 = ssub.s32 1, %s2
  %s5 = scalar_select 0, %s4, %s2
  // Predicated region
  $region2: #{pair_norm.1} parent=0 // pred_check
    _
  $region3: #{pair_norm.1} parent=0 // pred_check_branch
    %7 = sbr.rel (0) target = $region5
  $region4: #{pair_norm.1} parent=0 // pred_region
    _
  $region5: #{pair_norm.1} parent=0 // pred_fallthru
    _
  %v8 = vld [vmem:[%s0] sm:$0xff]
  %v9 = vld [vmem:[%s0 + $0x8] sm:$0xff]
  %v10 = vld [vmem:[%s0 + $0x10] sm:$0xff]
  %v11 = vld [vmem:[%s0 + $0x18] sm:$0xff]
  %v12 = vadd.f32 %v8, %v9
  %v13 = vadd.f32 %v12, %v10
  %v14 = vadd.f32 %v13, %v11
  %v15 = vrot.slane %v14, 4
  %v16 = vadd.f32 %v14, %v15
  %v17 = vrot.slane %v16, 2
  %v18 = vadd.f32 %v16, %v17
  %v19 = vrot.slane %v18, 1
  %v20 = vadd.f32 %v18, %v19
  %v21 = vlaneseq
  %v22 = vshrl.u32 %v21, 7
  %v23 = vadd.s32 %v22, 8
  %v24 = vadd.s32 %v22, 16
  %v25 = vadd.s32 %v22, 24
  %v26 = vadd.s32 %v22, 32
  %v27 = vadd.s32 %v22, 40
  %v28 = vadd.s32 %v22, 48
  %v29 = vadd.s32 %v22, 56
  %v30 = vadd.s32 %v22, 64
  %v31 = vadd.s32 %v22, 72
  %v32 = vadd.s32 %v22, 80
  %v33 = vadd.s32 %v22, 88
  %v34 = vadd.s32 %v22, 96
  %v35 = vadd.s32 %v22, 104
  %v36 = vadd.s32 %v22, 112
  %v37 = vadd.s32 %v22, 120
  %vm38 = vcmp.lt.s32.totalorder %v22, 0
  %v39 = vsub.s32 0, %v22
  %v40 = vsel %vm38, %v39, %v22
  %v41 = vshrl.u32 %v40, 5
  %v42 = vand.u32 %v40, 31
  %v43 = vsub.s32 0, %v42
  %v44 = vsel %vm38, %v43, %v42
  %vm45 = vcmp.lt.s32.totalorder %v23, 0
  %v46 = vsub.s32 0, %v23
  %v47 = vsel %vm45, %v46, %v23
  %v48 = vshrl.u32 %v47, 5
  %v49 = vand.u32 %v47, 31
  %v50 = vsub.s32 0, %v49
  %v51 = vsel %vm45, %v50, %v49
  %vm52 = vcmp.lt.s32.totalorder %v24, 0
  %v53 = vsub.s32 0, %v24
  %v54 = vsel %vm52, %v53, %v24
  %v55 = vshrl.u32 %v54, 5
  %v56 = vand.u32 %v54, 31
  %v57 = vsub.s32 0, %v56
  %v58 = vsel %vm52, %v57, %v56
  %vm59 = vcmp.lt.s32.totalorder %v25, 0
  %v60 = vsub.s32 0, %v25
  %v61 = vsel %vm59, %v60, %v25
  %v62 = vshrl.u32 %v61, 5
  %v63 = vand.u32 %v61, 31
  %v64 = vsub.s32 0, %v63
  %v65 = vsel %vm59, %v64, %v63
  %vm66 = vcmp.lt.s32.totalorder %v26, 0
  %v67 = vsub.s32 0, %v26
  %v68 = vsel %vm66, %v67, %v26
  %v69 = vshrl.u32 %v68, 5
  %v70 = vand.u32 %v68, 31
  %v71 = vsub.s32 0, %v70
  %v72 = vsel %vm66, %v71, %v70
  %vm73 = vcmp.lt.s32.totalorder %v27, 0
  %v74 = vsub.s32 0, %v27
  %v75 = vsel %vm73, %v74, %v27
  %v76 = vshrl.u32 %v75, 5
  %v77 = vand.u32 %v75, 31
  %v78 = vsub.s32 0, %v77
  %v79 = vsel %vm73, %v78, %v77
  %vm80 = vcmp.lt.s32.totalorder %v28, 0
  %v81 = vsub.s32 0, %v28
  %v82 = vsel %vm80, %v81, %v28
  %v83 = vshrl.u32 %v82, 5
  %v84 = vand.u32 %v82, 31
  %v85 = vsub.s32 0, %v84
  %v86 = vsel %vm80, %v85, %v84
  %vm87 = vcmp.lt.s32.totalorder %v29, 0
  %v88 = vsub.s32 0, %v29
  %v89 = vsel %vm87, %v88, %v29
  %v90 = vshrl.u32 %v89, 5
  %v91 = vand.u32 %v89, 31
  %v92 = vsub.s32 0, %v91
  %v93 = vsel %vm87, %v92, %v91
  %vm94 = vcmp.lt.s32.totalorder %v30, 0
  %v95 = vsub.s32 0, %v30
  %v96 = vsel %vm94, %v95, %v30
  %v97 = vshrl.u32 %v96, 5
  %v98 = vand.u32 %v96, 31
  %v99 = vsub.s32 0, %v98
  %v100 = vsel %vm94, %v99, %v98
  %vm101 = vcmp.lt.s32.totalorder %v31, 0
  %v102 = vsub.s32 0, %v31
  %v103 = vsel %vm101, %v102, %v31
  %v104 = vshrl.u32 %v103, 5
  %v105 = vand.u32 %v103, 31
  %v106 = vsub.s32 0, %v105
  %v107 = vsel %vm101, %v106, %v105
  %vm108 = vcmp.lt.s32.totalorder %v32, 0
  %v109 = vsub.s32 0, %v32
  %v110 = vsel %vm108, %v109, %v32
  %v111 = vshrl.u32 %v110, 5
  %v112 = vand.u32 %v110, 31
  %v113 = vsub.s32 0, %v112
  %v114 = vsel %vm108, %v113, %v112
  %vm115 = vcmp.lt.s32.totalorder %v33, 0
  %v116 = vsub.s32 0, %v33
  %v117 = vsel %vm115, %v116, %v33
  %v118 = vshrl.u32 %v117, 5
  %v119 = vand.u32 %v117, 31
  %v120 = vsub.s32 0, %v119
  %v121 = vsel %vm115, %v120, %v119
  %vm122 = vcmp.lt.s32.totalorder %v34, 0
  %v123 = vsub.s32 0, %v34
  %v124 = vsel %vm122, %v123, %v34
  %v125 = vshrl.u32 %v124, 5
  %v126 = vand.u32 %v124, 31
  %v127 = vsub.s32 0, %v126
  %v128 = vsel %vm122, %v127, %v126
  %vm129 = vcmp.lt.s32.totalorder %v35, 0
  %v130 = vsub.s32 0, %v35
  %v131 = vsel %vm129, %v130, %v35
  %v132 = vshrl.u32 %v131, 5
  %v133 = vand.u32 %v131, 31
  %v134 = vsub.s32 0, %v133
  %v135 = vsel %vm129, %v134, %v133
  %vm136 = vcmp.lt.s32.totalorder %v36, 0
  %v137 = vsub.s32 0, %v36
  %v138 = vsel %vm136, %v137, %v36
  %v139 = vshrl.u32 %v138, 5
  %v140 = vand.u32 %v138, 31
  %v141 = vsub.s32 0, %v140
  %v142 = vsel %vm136, %v141, %v140
  %vm143 = vcmp.lt.s32.totalorder %v37, 0
  %v144 = vsub.s32 0, %v37
  %v145 = vsel %vm143, %v144, %v37
  %v146 = vshrl.u32 %v145, 5
  %v147 = vand.u32 %v145, 31
  %v148 = vsub.s32 0, %v147
  %v149 = vsel %vm143, %v148, %v147
  %vm150 = vcmp.ne.s32.totalorder %v44, 0
  %vm151 = vcmp.ne.s32.totalorder %v51, 0
  %vm152 = vcmp.ne.s32.totalorder %v58, 0
  %vm153 = vcmp.ne.s32.totalorder %v65, 0
  %vm154 = vcmp.ne.s32.totalorder %v72, 0
  %vm155 = vcmp.ne.s32.totalorder %v79, 0
  %vm156 = vcmp.ne.s32.totalorder %v86, 0
  %vm157 = vcmp.ne.s32.totalorder %v93, 0
  %vm158 = vcmp.ne.s32.totalorder %v100, 0
  %vm159 = vcmp.ne.s32.totalorder %v107, 0
  %vm160 = vcmp.ne.s32.totalorder %v114, 0
  %vm161 = vcmp.ne.s32.totalorder %v121, 0
  %vm162 = vcmp.ne.s32.totalorder %v128, 0
  %vm163 = vcmp.ne.s32.totalorder %v135, 0
  %vm164 = vcmp.ne.s32.totalorder %v142, 0
  %vm165 = vcmp.ne.s32.totalorder %v149, 0
  %vm166 = vcmp.lt.s32.totalorder %v44, 0
  %vm167 = vcmp.lt.s32.totalorder %v51, 0
  %vm168 = vcmp.lt.s32.totalorder %v58, 0
  %vm169 = vcmp.lt.s32.totalorder %v65, 0
  %vm170 = vcmp.lt.s32.totalorder %v72, 0
  %vm171 = vcmp.lt.s32.totalorder %v79, 0
  %vm172 = vcmp.lt.s32.totalorder %v86, 0
  %vm173 = vcmp.lt.s32.totalorder %v93, 0
  %vm174 = vcmp.lt.s32.totalorder %v100, 0
  %vm175 = vcmp.lt.s32.totalorder %v107, 0
  %vm176 = vcmp.lt.s32.totalorder %v114, 0
  %vm177 = vcmp.lt.s32.totalorder %v121, 0
  %vm178 = vcmp.lt.s32.totalorder %v128, 0
  %vm179 = vcmp.lt.s32.totalorder %v135, 0
  %vm180 = vcmp.lt.s32.totalorder %v142, 0
  %vm181 = vcmp.lt.s32.totalorder %v149, 0
  %vm182 = vmand %vm166, %vm150
  %vm183 = vmand %vm167, %vm151
  %vm184 = vmand %vm168, %vm152
  %vm185 = vmand %vm169, %vm153
  %vm186 = vmand %vm170, %vm154
  %vm187 = vmand %vm171, %vm155
  %vm188 = vmand %vm172, %vm156
  %vm189 = vmand %vm173, %vm157
  %vm190 = vmand %vm174, %vm158
  %vm191 = vmand %vm175, %vm159
  %vm192 = vmand %vm176, %vm160
  %vm193 = vmand %vm177, %vm161
  %vm194 = vmand %vm178, %vm162
  %vm195 = vmand %vm179, %vm163
  %vm196 = vmand %vm180, %vm164
  %vm197 = vmand %vm181, %vm165
  %v198 = vadd.s32 %v44, 32
  %v199 = vadd.s32 %v51, 32
  %v200 = vadd.s32 %v58, 32
  %v201 = vadd.s32 %v65, 32
  %v202 = vadd.s32 %v72, 32
  %v203 = vadd.s32 %v79, 32
  %v204 = vadd.s32 %v86, 32
  %v205 = vadd.s32 %v93, 32
  %v206 = vadd.s32 %v100, 32
  %v207 = vadd.s32 %v107, 32
  %v208 = vadd.s32 %v114, 32
  %v209 = vadd.s32 %v121, 32
  %v210 = vadd.s32 %v128, 32
  %v211 = vadd.s32 %v135, 32
  %v212 = vadd.s32 %v142, 32
  %v213 = vadd.s32 %v149, 32
  %v214 = vsel %vm182, %v198, %v44
  %v215 = vsel %vm183, %v199, %v51
  %v216 = vsel %vm184, %v200, %v58
  %v217 = vsel %vm185, %v201, %v65
  %v218 = vsel %vm186, %v202, %v72
  %v219 = vsel %vm187, %v203, %v79
  %v220 = vsel %vm188, %v204, %v86
  %v221 = vsel %vm189, %v205, %v93
  %v222 = vsel %vm190, %v206, %v100
  %v223 = vsel %vm191, %v207, %v107
  %v224 = vsel %vm192, %v208, %v114
  %v225 = vsel %vm193, %v209, %v121
  %v226 = vsel %vm194, %v210, %v128
  %v227 = vsel %vm195, %v211, %v135
  %v228 = vsel %vm196, %v212, %v142
  %v229 = vsel %vm197, %v213, %v149
  %v230 = vlaneseq
  %v231 = vand.u32 %v230, 127
  %vm232 = vcmp.lt.s32.totalorder %v231, 0
  %v233 = vsub.s32 0, %v231
  %v234 = vsel %vm232, %v233, %v231
  %v235 = vshrl.u32 %v234, 5
  %v236 = vand.u32 %v234, 31
  %v237 = vsub.s32 0, %v236
  %v238 = vsel %vm232, %v237, %v236
  %vm239 = vcmp.ne.s32.totalorder %v238, 0
  %vm240 = vcmp.lt.s32.totalorder %v238, 0
  %vm241 = vmand %vm240, %vm239
  %v242 = vadd.s32 %v238, 32
  %v243 = vsel %vm241, %v242, %v238
  %vm244 = vcmp.eq.s32.totalorder %v214, %v243
  %vm245 = vcmp.eq.s32.totalorder %v215, %v243
  %vm246 = vcmp.eq.s32.totalorder %v216, %v243
  %vm247 = vcmp.eq.s32.totalorder %v217, %v243
  %vm248 = vcmp.eq.s32.totalorder %v218, %v243
  %vm249 = vcmp.eq.s32.totalorder %v219, %v243
  %vm250 = vcmp.eq.s32.totalorder %v220, %v243
  %vm251 = vcmp.eq.s32.totalorder %v221, %v243
  %vm252 = vcmp.eq.s32.totalorder %v222, %v243
  %vm253 = vcmp.eq.s32.totalorder %v223, %v243
  %vm254 = vcmp.eq.s32.totalorder %v224, %v243
  %vm255 = vcmp.eq.s32.totalorder %v225, %v243
  %vm256 = vcmp.eq.s32.totalorder %v226, %v243
  %vm257 = vcmp.eq.s32.totalorder %v227, %v243
  %vm258 = vcmp.eq.s32.totalorder %v228, %v243
  %vm259 = vcmp.eq.s32.totalorder %v229, %v243
  %v260 = vsel %vm244, 1, 0
  %v261 = vsel %vm245, 1, 0
  %v262 = vsel %vm246, 1, 0
  %v263 = vsel %vm247, 1, 0
  %v264 = vsel %vm248, 1, 0
  %v265 = vsel %vm249, 1, 0
  %v266 = vsel %vm250, 1, 0
  %v267 = vsel %vm251, 1, 0
  %v268 = vsel %vm252, 1, 0
  %v269 = vsel %vm253, 1, 0
  %v270 = vsel %vm254, 1, 0
  %v271 = vsel %vm255, 1, 0
  %v272 = vsel %vm256, 1, 0
  %v273 = vsel %vm257, 1, 0
  %v274 = vsel %vm258, 1, 0
  %v275 = vsel %vm259, 1, 0
  %v276 = vcvt.s32.f32 %v260
  %v277 = vcvt.s32.f32 %v261
  %v278 = vcvt.s32.f32 %v262
  %v279 = vcvt.s32.f32 %v263
  %v280 = vcvt.s32.f32 %v264
  %v281 = vcvt.s32.f32 %v265
  %v282 = vcvt.s32.f32 %v266
  %v283 = vcvt.s32.f32 %v267
  %v284 = vcvt.s32.f32 %v268
  %v285 = vcvt.s32.f32 %v269
  %v286 = vcvt.s32.f32 %v270
  %v287 = vcvt.s32.f32 %v271
  %v288 = vcvt.s32.f32 %v272
  %v289 = vcvt.s32.f32 %v273
  %v290 = vcvt.s32.f32 %v274
  %v291 = vcvt.s32.f32 %v275
  %292 = vmatprep.subr.mxu0 0.0
  %293 = vmatpush1.msra.mxu0 %v276
  %294 = vmatprep.subr.mxu0 0.0
  %295 = vmatpush1.msra.mxu0 %v277
  %296 = vmatprep.subr.mxu0 0.0
  %297 = vmatpush1.msra.mxu0 %v278
  %298 = vmatprep.subr.mxu0 0.0
  %299 = vmatpush1.msra.mxu0 %v279
  %300 = vmatprep.subr.mxu0 0.0
  %301 = vmatpush1.msra.mxu0 %v280
  %302 = vmatprep.subr.mxu0 0.0
  %303 = vmatpush1.msra.mxu0 %v281
  %304 = vmatprep.subr.mxu0 0.0
  %305 = vmatpush1.msra.mxu0 %v282
  %306 = vmatprep.subr.mxu0 0.0
  %307 = vmatpush1.msra.mxu0 %v283
  %308 = vmatprep.subr.mxu0 0.0
  %309 = vmatpush1.msra.mxu0 %v284
  %310 = vmatprep.subr.mxu0 0.0
  %311 = vmatpush1.msra.mxu0 %v285
  %312 = vmatprep.subr.mxu0 0.0
  %313 = vmatpush1.msra.mxu0 %v286
  %314 = vmatprep.subr.mxu0 0.0
  %315 = vmatpush1.msra.mxu0 %v287
  %316 = vmatprep.subr.mxu0 0.0
  %317 = vmatpush1.msra.mxu0 %v288
  %318 = vmatprep.subr.mxu0 0.0
  %319 = vmatpush1.msra.mxu0 %v289
  %320 = vmatprep.subr.mxu0 0.0
  %321 = vmatpush1.msra.mxu0 %v290
  %322 = vmatprep.subr.mxu0 0.0
  %323 = vmatpush1.msra.mxu0 %v291
  %324 = vmatprep.subr.mxu0 0.0
  %325 = vmatpush1.msra.mxu0 0.0
  %326 = vmatprep.subr.mxu0 0.0
  %327 = vmatpush1.msra.mxu0 0.0
  %328 = vmatprep.subr.mxu0 0.0
  %329 = vmatpush1.msra.mxu0 0.0
  %330 = vmatprep.subr.mxu0 0.0
  %331 = vmatpush1.msra.mxu0 0.0
  %332 = vmatprep.subr.mxu0 0.0
  %333 = vmatpush1.msra.mxu0 0.0
  %334 = vmatprep.subr.mxu0 0.0
  %335 = vmatpush1.msra.mxu0 0.0
  %336 = vmatprep.subr.mxu0 0.0
  %337 = vmatpush1.msra.mxu0 0.0
  %338 = vmatprep.subr.mxu0 0.0
  %339 = vmatpush1.msra.mxu0 0.0
  %340 = vmatprep.subr.mxu0 0.0
  %341 = vmatpush1.msra.mxu0 0.0
  %342 = vmatprep.subr.mxu0 0.0
  %343 = vmatpush1.msra.mxu0 0.0
  %344 = vmatprep.subr.mxu0 0.0
  %345 = vmatpush1.msra.mxu0 0.0
  %346 = vmatprep.subr.mxu0 0.0
  %347 = vmatpush1.msra.mxu0 0.0
  %348 = vmatprep.subr.mxu0 0.0
  %349 = vmatpush1.msra.mxu0 0.0
  %350 = vmatprep.subr.mxu0 0.0
  %351 = vmatpush1.msra.mxu0 0.0
  %352 = vmatprep.subr.mxu0 0.0
  %353 = vmatpush1.msra.mxu0 0.0
  %354 = vmatprep.subr.mxu0 0.0
  %355 = vmatpush1.msra.mxu0 0.0
  %356 = vmatprep.mubr.f32.mxu0 0.0
  %357 = vmatmul.mubr.f32.gmra.mrb[0].mxu0 %v20
  %v358 = vpop.f32.mrb[0].mxu0
  %v359 = vadd.f32 0.0, %v358
  %v360 = vpop.f32.mrb[0].mxu0
  %361 = vdwg.mxu0
  %v362 = vmul.f32 %v359, 0.0078125
  %v363 = vlaneseq
  %v364 = vshrl.u32 %v363, 7
  %v365 = vsub.s32 0, %v364
  %v366 = vrot.slane %v362, %v365
  %v367 = vsub.f32 %v8, %v366
  %v368 = vsub.f32 %v9, %v366
  %v369 = vsub.f32 %v10, %v366
  %v370 = vsub.f32 %v11, %v366
  %v371 = vmul.f32 %v367, %v367
  %v372 = vmul.f32 %v368, %v368
  %v373 = vmul.f32 %v369, %v369
  %v374 = vmul.f32 %v370, %v370
  %375 = vadd.xlane.f32.xlu0 %v371
  %v376 = vpop.xlane.xlu0 %375
  %377 = vadd.xlane.f32.xlu0 %v372
  %v378 = vpop.xlane.xlu0 %377
  %379 = vadd.xlane.f32.xlu0 %v373
  %v380 = vpop.xlane.xlu0 %379
  %381 = vadd.xlane.f32.xlu0 %v374
  %v382 = vpop.xlane.xlu0 %381
  %v383 = vadd.f32 %v376, %v378
  %v384 = vadd.f32 %v383, %v380
  %v385 = vadd.f32 %v384, %v382
  %v386 = vrot.slane %v385, 4
  %v387 = vadd.f32 %v385, %v386
  %v388 = vrot.slane %v387, 2
  %v389 = vadd.f32 %v387, %v388
  %v390 = vrot.slane %v389, 1
  %v391 = vadd.f32 %v389, %v390
  %v392 = vmul.f32 %v391, 0.0078125
  %v393 = vadd.f32 %v392, 1e-05
  %v394 = vrsqrt.pop %v393
  %v395 = vmul.f32 %v393, %v394
  %vm396 = vcmp.eq.f32.partialorder %v393, inf
  %v397 = vsel %vm396, %v393, %v395
  %vm398 = vcmp.eq.f32.partialorder %v393, 0.0
  %v399 = vand.u32 %v393, 2147483648
  %v400 = vsel %vm398, %v399, %v397
  %v401 = vrcp.pop %v400
  %v402 = vmul.f32 1.0, %v401
  %v403 = vmul.f32 %v367, %v402
  %v404 = vmul.f32 %v368, %v402
  %v405 = vmul.f32 %v369, %v402
  %v406 = vmul.f32 %v370, %v402
  %407 = vst [vmem:[%s1] sm:$0xff] %v403
  %408 = vst [vmem:[%s1 + $0x8] sm:$0xff] %v404
  %409 = vst [vmem:[%s1 + $0x10] sm:$0xff] %v405
  %410 = vst [vmem:[%s1 + $0x18] sm:$0xff] %v406
  // Predicated region
  $region6: #{pair_norm.1} parent=0 // pred_check
    _
  $region7: #{pair_norm.1} parent=0 // pred_check_branch
    %412 = sbr.rel (0) target = $region9
  $region8: #{pair_norm.1} parent=0 // pred_region
    _
  $region9: #{pair_norm.1} parent=0 // pred_fallthru
    _
  // Predicated region
  $region10: #{pair_norm.1} parent=0 // pred_check
    _
  $region11: #{pair_norm.1} parent=0 // pred_check_branch
    %414 = sbr.rel (0) target = $region13
  $region12: #{pair_norm.1} parent=0 // pred_region
    _
  $region13: #{pair_norm.1} parent=0 // pred_fallthru
    _

</llo_original>
